<compile_context>
chip_gen: v7x
topology: tpu7x:2x2x1
jax: 0.10.0
libtpu: 0.0.40
codegen_flags: <defaults>
</compile_context>

<pallas_src>
import functools

import jax
import jax.numpy as jnp
from jax.experimental import pallas as pl
from jax.experimental.pallas import tpu as pltpu

_LANES = 128
_SUBLANES = 8
_PALLAS_MIN_ELEMS = 65536  # below this, the fused pure-JAX path wins.


def _round_up(x: int, m: int) -> int:
    return (x + m - 1) // m * m


def _stable_log_sigmoid(x):
    # log(sigmoid(x)) = min(x, 0) - log1p(exp(-|x|))   (numerically stable)
    return jnp.minimum(x, 0.0) - jnp.log1p(jnp.exp(-jnp.abs(x)))


def _dpo_loss_kernel(
    *refs,
    beta: float,
    loss_type: str,
    reference_free: bool,
    dpop_penalty_weight: float,
    n_valid: int,
    block_rows: int,
    blocks_per_core: int,
    n_blocks: int,
    has_ref_inputs: bool,
    needs_mask: bool,
):
    if has_ref_inputs:
        pc_ref, pr_ref, rc_ref, rr_ref, out_ref, acc_ref = refs
    else:
        pc_ref, pr_ref, out_ref, acc_ref = refs
        rc_ref = rr_ref = None

    i = pl.program_id(1)
    # Logical block index across the whole (core-split) iteration space.
    logical_block = pl.program_id(0) * blocks_per_core + i

    @pl.when(i == 0)
    def _():
        acc_ref[...] = jnp.zeros_like(acc_ref)

    pc = pc_ref[...].astype(jnp.float32)
    pr = pr_ref[...].astype(jnp.float32)
    pi_logratios = pc - pr

    if has_ref_inputs:
        rc = rc_ref[...].astype(jnp.float32)
        rr = rr_ref[...].astype(jnp.float32)

    if reference_free:
        logits = pi_logratios
    else:
        logits = pi_logratios - (rc - rr)

    if loss_type == "sigmoid":
        losses = -_stable_log_sigmoid(beta * logits)
    elif loss_type == "hinge":
        losses = jnp.maximum(1.0 - beta * logits, 0.0)
    elif loss_type == "ipo":
        d = logits - 1.0 / (2.0 * beta)
        losses = d * d
    elif loss_type == "dpop":
        dpop_penalty = jnp.maximum(rc - pc, 0.0)
        losses = -_stable_log_sigmoid(
            beta * (logits - dpop_penalty_weight * dpop_penalty)
        )
    else:
        raise ValueError(f"Unknown loss type: {loss_type}")

    def accumulate(vals):
        # Sublane-aligned fold (VALU only); single cross-lane reduce happens
        # in the wrapper over the tiny (n_split, 8, 128) partials.
        acc_ref[...] += vals.reshape(
            block_rows // _SUBLANES, _SUBLANES, _LANES
        ).sum(axis=0)

    if needs_mask:
        is_tail = logical_block >= n_blocks - 1

        @pl.when(jnp.logical_not(is_tail))
        def _():
            accumulate(losses)

        @pl.when(is_tail)
        def _():
            rows_i = jax.lax.broadcasted_iota(jnp.int32, losses.shape, 0)
            lanes_i = jax.lax.broadcasted_iota(jnp.int32, losses.shape, 1)
            # int32 flat index: overflows only past ~2.1e9 padded elements.
            flat_idx = (logical_block * block_rows + rows_i) * _LANES + lanes_i
            accumulate(jnp.where(flat_idx < n_valid, losses, 0.0))
    else:
        accumulate(losses)

    @pl.when(i == blocks_per_core - 1)
    def _():
        out_ref[0] = acc_ref[...]


def _dpo_loss_ref(pc, pr, rc, rr, *, beta, loss_type, reference_free,
                  dpop_penalty_weight):
    """Pure-JAX reference matching the PyTorch module semantics.

    Also used as the small-batch fast path (one fused XLA elementwise+reduce).
    """
    pc, pr, rc, rr = (x.astype(jnp.float32) for x in (pc, pr, rc, rr))
    pi_logratios = pc - pr
    ref_logratios = 0.0 if reference_free else (rc - rr)
    logits = pi_logratios - ref_logratios
    if loss_type == "sigmoid":
        losses = -jax.nn.log_sigmoid(beta * logits)
    elif loss_type == "hinge":
        losses = jax.nn.relu(1.0 - beta * logits)
    elif loss_type == "ipo":
        losses = (logits - 1.0 / (2.0 * beta)) ** 2
    elif loss_type == "dpop":
        dpop_penalty = jnp.maximum(rc - pc, 0.0)
        logits = logits - dpop_penalty_weight * dpop_penalty
        losses = -jax.nn.log_sigmoid(beta * logits)
    else:
        raise ValueError(loss_type)
    return losses.mean()


def dpo_loss(
    policy_chosen_logps,
    policy_rejected_logps,
    reference_chosen_logps,
    reference_rejected_logps,
    *,
    beta: float = 0.1,
    loss_type: str = "sigmoid",
    reference_free: bool = False,
    dpop_penalty_weight: float = 5.0,
    block_rows: int = 2048,
    use_pallas: bool | None = None,
):
    """DPO loss. Inputs are 1-D arrays of shape (B,) (any float dtype)."""
    b = policy_chosen_logps.shape[0]

    if use_pallas is None:
        use_pallas = b >= _PALLAS_MIN_ELEMS
    if not use_pallas:
        # Small-batch fast path: launch/pad overhead dominates any kernel.
        return _dpo_loss_ref(
            policy_chosen_logps, policy_rejected_logps,
            reference_chosen_logps, reference_rejected_logps,
            beta=beta, loss_type=loss_type, reference_free=reference_free,
            dpop_penalty_weight=dpop_penalty_weight)

    has_ref_inputs = (not reference_free) or (loss_type == "dpop")

    # ---- tiling ------------------------------------------------------------
    rows = pl.cdiv(b, _LANES)
    rows_padded = _round_up(rows, _SUBLANES)          # pad to one (8,128) tile
    n_pad_elems = rows_padded * _LANES

    block_rows = max(_SUBLANES, _round_up(block_rows, _SUBLANES))
    block_rows = min(block_rows, rows_padded)
    n_blocks = pl.cdiv(rows_padded, block_rows)

    # Megacore split: one "parallel" axis of size 2 (v7x: both TCs stream HBM;
    # v5e/v6e: a no-op extra loop level).
    n_split = 2 if n_blocks >= 2 else 1
    blocks_per_core = pl.cdiv(n_blocks, n_split)
    grid = (n_split, blocks_per_core)

    # Mask only needed if the logical blocks don't cover exactly B elements.
    needs_mask = (n_split * blocks_per_core * block_rows * _LANES) != b

    def as_tile(x):
        # Keep native dtype in HBM (bf16 stays bf16); cast to f32 in-kernel.
        if b != n_pad_elems:
            x = jnp.pad(x, (0, n_pad_elems - b))
        return x.reshape(rows_padded, _LANES)

    if has_ref_inputs:
        args = (policy_chosen_logps, policy_rejected_logps,
                reference_chosen_logps, reference_rejected_logps)
    else:
        # reference logps unused -> do not DMA them at all.
        args = (policy_chosen_logps, policy_rejected_logps)
    args = tuple(as_tile(a) for a in args)

    def in_index(c, i):
        # Clamp so duplicated tail blocks (when n_blocks % n_split != 0) stay
        # in bounds; their contribution is masked to zero in-kernel.
        return (jnp.minimum(c * blocks_per_core + i, n_blocks - 1), 0)

    kernel = functools.partial(
        _dpo_loss_kernel,
        beta=float(beta),
        loss_type=loss_type,
        reference_free=reference_free,
        dpop_penalty_weight=float(dpop_penalty_weight),
        n_valid=b,
        block_rows=block_rows,
        blocks_per_core=blocks_per_core,
        n_blocks=n_blocks,
        has_ref_inputs=has_ref_inputs,
        needs_mask=needs_mask,
    )

    partials = pl.pallas_call(
        kernel,
        out_shape=jax.ShapeDtypeStruct((n_split, _SUBLANES, _LANES), jnp.float32),
        grid=grid,
        in_specs=[pl.BlockSpec((block_rows, _LANES), in_index)] * len(args),
        out_specs=pl.BlockSpec((1, _SUBLANES, _LANES), lambda c, i: (c, 0, 0)),
        scratch_shapes=[pltpu.VMEM((_SUBLANES, _LANES), jnp.float32)],
        compiler_params=pltpu.CompilerParams(
            dimension_semantics=("parallel", "arbitrary"),
            vmem_limit_bytes=32 * 1024 * 1024,
            # Let XLA fuse the tiny tail-pad/reshape into the operand fetch
            # instead of materializing a padded copy in HBM.
            allow_input_fusion=[True] * len(args),
        ),
    )(*args)

    # Single cross-lane reduce over (n_split, 8, 128) partials + mean scale.
    return jnp.sum(partials) / b


if __name__ == "__main__":
    key = jax.random.PRNGKey(0)

    def make_inputs(b, dtype=jnp.float32):
        k1, k2, k3, k4 = jax.random.split(key, 4)
        # Log-probabilities are negative numbers; scale to a realistic range.
        mk = lambda k: (-jnp.abs(jax.random.normal(k, (b,), jnp.float32)) * 5.0).astype(dtype)
        return mk(k1), mk(k2), mk(k3), mk(k4)

    configs = [
        dict(beta=0.1, loss_type="sigmoid", reference_free=False, dpop_penalty_weight=5.0),
        dict(beta=0.1, loss_type="hinge", reference_free=False, dpop_penalty_weight=5.0),
        dict(beta=0.1, loss_type="ipo", reference_free=True, dpop_penalty_weight=5.0),
        dict(beta=0.1, loss_type="dpop", reference_free=False, dpop_penalty_weight=5.0),
    ]

    # Small batch of (chosen, rejected) pairs — module-typical demo shape.
    # Force the Pallas path so the kernel itself is exercised and verified.
    inputs_small = make_inputs(8)
    for cfg in configs:
        out = jax.block_until_ready(dpo_loss(*inputs_small, use_pallas=True, **cfg))
        ref = _dpo_loss_ref(*inputs_small, **cfg)
        assert jnp.allclose(out, ref, rtol=1e-5, atol=1e-5), (cfg, float(out), float(ref))

    # Larger, non-aligned batch with a small block: exercises the multi-block
    # reduction, the 2-way core split (with a clamped duplicate block) and the
    # ragged-tail masking.
    inputs_big = make_inputs(2500)
    cfg = dict(beta=0.1, loss_type="sigmoid", reference_free=False, dpop_penalty_weight=5.0)
    out = jax.block_until_ready(dpo_loss(*inputs_big, block_rows=8, use_pallas=True, **cfg))
    ref = _dpo_loss_ref(*inputs_big, **cfg)
    assert jnp.allclose(out, ref, rtol=1e-5, atol=1e-5), (float(out), float(ref))

    # bf16 inputs: HBM traffic stays bf16, f32 accumulation happens in-kernel.
    inputs_bf16 = make_inputs(8, dtype=jnp.bfloat16)
    out = jax.block_until_ready(dpo_loss(*inputs_bf16, use_pallas=True, **cfg))
    ref = _dpo_loss_ref(*inputs_bf16, **cfg)
    assert jnp.allclose(out, ref, rtol=1e-5, atol=1e-5), (float(out), float(ref))

    # Auto path: tiny batch takes the fused pure-JAX fast path.
    out = jax.block_until_ready(dpo_loss(*inputs_small, **cfg))
    ref = _dpo_loss_ref(*inputs_small, **cfg)
    assert jnp.allclose(out, ref, rtol=1e-5, atol=1e-5), (float(out), float(ref))

    print("KERNEL_OK")
</pallas_src>

<mosaic_0001>
module attributes {stable_mosaic.version = 11 : i64} {
  func.func @_dpo_loss_kernel(%arg0: i32, %arg1: i32, %arg2: memref<8x128xf32, #tpu.memory_space<vmem>>, %arg3: memref<8x128xf32, #tpu.memory_space<vmem>>, %arg4: memref<8x128xf32, #tpu.memory_space<vmem>>, %arg5: memref<8x128xf32, #tpu.memory_space<vmem>>, %arg6: memref<1x8x128xf32, #tpu.memory_space<vmem>>, %arg7: memref<8x128xf32, #tpu.memory_space<vmem>>) attributes {dimension_semantics = [#tpu.dimension_semantics<parallel>, #tpu.dimension_semantics<arbitrary>], iteration_bounds = array<i64: 1, 1>, scalar_prefetch = 0 : i64, scratch_operands = 1 : i64, tpu.core_type = #tpu.core_type<tc>, window_params = [{transform_indices = @transform_0, window_bounds = array<i64: 8, 128>}, {transform_indices = @transform_1, window_bounds = array<i64: 8, 128>}, {transform_indices = @transform_2, window_bounds = array<i64: 8, 128>}, {transform_indices = @transform_3, window_bounds = array<i64: 8, 128>}, {transform_indices = @transform_4, window_bounds = array<i64: 1, 8, 128>}]} {
    %c1_i32 = arith.constant 1 : i32
    %0 = arith.muli %arg0, %c1_i32 : i32
    %1 = arith.addi %0, %arg1 : i32
    %c0_i32 = arith.constant 0 : i32
    %2 = arith.cmpi eq, %arg1, %c0_i32 : i32
    %3 = arith.extui %2 : i1 to i32
    %c0_i32_0 = arith.constant 0 : i32
    %4 = arith.cmpi ne, %3, %c0_i32_0 : i32
    scf.if %4 {
      %cst_16 = arith.constant 0.000000e+00 : f32
      %33 = vector.broadcast %cst_16 : f32 to vector<8x128xf32>
      %c0_17 = arith.constant 0 : index
      %c0_18 = arith.constant 0 : index
      %34 = vector.load %arg7[%c0_17, %c0_18] : memref<8x128xf32, #tpu.memory_space<vmem>>, vector<8x128xf32>
      tpu.vector_store %arg7[%c0_17, %c0_18], %33 {strides = array<i32>} : memref<8x128xf32, #tpu.memory_space<vmem>>, vector<8x128xf32>,
    } else {
    }
    %c0 = arith.constant 0 : index
    %c0_1 = arith.constant 0 : index
    %5 = vector.load %arg2[%c0, %c0_1] : memref<8x128xf32, #tpu.memory_space<vmem>>, vector<8x128xf32>
    %c0_2 = arith.constant 0 : index
    %c0_3 = arith.constant 0 : index
    %6 = vector.load %arg3[%c0_2, %c0_3] : memref<8x128xf32, #tpu.memory_space<vmem>>, vector<8x128xf32>
    %7 = arith.subf %5, %6 : vector<8x128xf32>
    %c0_4 = arith.constant 0 : index
    %c0_5 = arith.constant 0 : index
    %8 = vector.load %arg4[%c0_4, %c0_5] : memref<8x128xf32, #tpu.memory_space<vmem>>, vector<8x128xf32>
    %c0_6 = arith.constant 0 : index
    %c0_7 = arith.constant 0 : index
    %9 = vector.load %arg5[%c0_6, %c0_7] : memref<8x128xf32, #tpu.memory_space<vmem>>, vector<8x128xf32>
    %10 = arith.subf %8, %9 : vector<8x128xf32>
    %11 = arith.subf %7, %10 : vector<8x128xf32>
    %cst = arith.constant 1.000000e-01 : f32
    %12 = vector.broadcast %cst : f32 to vector<8x128xf32>
    %13 = arith.mulf %12, %11 : vector<8x128xf32>
    %cst_8 = arith.constant 0.000000e+00 : f32
    %14 = vector.broadcast %cst_8 : f32 to vector<8x128xf32>
    %15 = arith.minimumf %13, %14 : vector<8x128xf32>
    %16 = math.absf %13 : vector<8x128xf32>
    %cst_9 = arith.constant 0.000000e+00 : f32
    %17 = vector.broadcast %cst_9 : f32 to vector<8x128xf32>
    %18 = arith.subf %17, %16 : vector<8x128xf32>
    %19 = math.exp %18 : vector<8x128xf32>
    %20 = math.log1p %19 : vector<8x128xf32>
    %21 = arith.subf %15, %20 : vector<8x128xf32>
    %cst_10 = arith.constant 0.000000e+00 : f32
    %22 = vector.broadcast %cst_10 : f32 to vector<8x128xf32>
    %23 = arith.subf %22, %21 : vector<8x128xf32>
    %c0_i32_11 = arith.constant 0 : i32
    %24 = arith.cmpi sge, %1, %c0_i32_11 : i32
    %true = arith.constant true
    %25 = arith.xori %24, %true : i1
    %26 = arith.extui %25 : i1 to i32
    %c0_i32_12 = arith.constant 0 : i32
    %27 = arith.cmpi ne, %26, %c0_i32_12 : i32
    scf.if %27 {
      %c0_16 = arith.constant 0 : index
      %c0_17 = arith.constant 0 : index
      %33 = vector.load %arg7[%c0_16, %c0_17] : memref<8x128xf32, #tpu.memory_space<vmem>>, vector<8x128xf32>
      %34 = vector.shape_cast %23 : vector<8x128xf32> to vector<1x8x128xf32>
      %cst_18 = arith.constant dense<0.000000e+00> : vector<8x128xf32>
      %35 = vector.multi_reduction <add>, %34, %cst_18 [0] : vector<1x8x128xf32> to vector<8x128xf32>
      %36 = arith.addf %33, %35 : vector<8x128xf32>
      %c0_19 = arith.constant 0 : index
      %c0_20 = arith.constant 0 : index
      %37 = vector.load %arg7[%c0_19, %c0_20] : memref<8x128xf32, #tpu.memory_space<vmem>>, vector<8x128xf32>
      tpu.vector_store %arg7[%c0_19, %c0_20], %36 {strides = array<i32>} : memref<8x128xf32, #tpu.memory_space<vmem>>, vector<8x128xf32>,
    } else {
    }
    %28 = arith.extui %24 : i1 to i32
    %c0_i32_13 = arith.constant 0 : i32
    %29 = arith.cmpi ne, %28, %c0_i32_13 : i32
    scf.if %29 {
      %33 = tpu.iota {dimensions = array<i32: 0>} : vector<8x128xi32>
      %34 = tpu.iota {dimensions = array<i32: 1>} : vector<8x128xi32>
      %c8_i32 = arith.constant 8 : i32
      %35 = arith.muli %1, %c8_i32 : i32
      %36 = vector.broadcast %35 : i32 to vector<8x128xi32>
      %37 = arith.addi %36, %33 : vector<8x128xi32>
      %c128_i32 = arith.constant 128 : i32
      %38 = vector.broadcast %c128_i32 : i32 to vector<8x128xi32>
      %39 = arith.muli %37, %38 : vector<8x128xi32>
      %40 = arith.addi %39, %34 : vector<8x128xi32>
      %c8_i32_16 = arith.constant 8 : i32
      %41 = vector.broadcast %c8_i32_16 : i32 to vector<8x128xi32>
      %42 = arith.cmpi slt, %40, %41 : vector<8x128xi32>
      %cst_17 = arith.constant 0.000000e+00 : f32
      %43 = vector.broadcast %cst_17 : f32 to vector<8x128xf32>
      %44 = arith.select %42, %23, %43 : vector<8x128xi1>, vector<8x128xf32>
      %c0_18 = arith.constant 0 : index
      %c0_19 = arith.constant 0 : index
      %45 = vector.load %arg7[%c0_18, %c0_19] : memref<8x128xf32, #tpu.memory_space<vmem>>, vector<8x128xf32>
      %46 = vector.shape_cast %44 : vector<8x128xf32> to vector<1x8x128xf32>
      %cst_20 = arith.constant dense<0.000000e+00> : vector<8x128xf32>
      %47 = vector.multi_reduction <add>, %46, %cst_20 [0] : vector<1x8x128xf32> to vector<8x128xf32>
      %48 = arith.addf %45, %47 : vector<8x128xf32>
      %c0_21 = arith.constant 0 : index
      %c0_22 = arith.constant 0 : index
      %49 = vector.load %arg7[%c0_21, %c0_22] : memref<8x128xf32, #tpu.memory_space<vmem>>, vector<8x128xf32>
      tpu.vector_store %arg7[%c0_21, %c0_22], %48 {strides = array<i32>} : memref<8x128xf32, #tpu.memory_space<vmem>>, vector<8x128xf32>,
    } else {
    }
    %c0_i32_14 = arith.constant 0 : i32
    %30 = arith.cmpi eq, %arg1, %c0_i32_14 : i32
    %31 = arith.extui %30 : i1 to i32
    %c0_i32_15 = arith.constant 0 : i32
    %32 = arith.cmpi ne, %31, %c0_i32_15 : i32
    scf.if %32 {
      %c0_16 = arith.constant 0 : index
      %c0_17 = arith.constant 0 : index
      %33 = vector.load %arg7[%c0_16, %c0_17] : memref<8x128xf32, #tpu.memory_space<vmem>>, vector<8x128xf32>
      %c0_18 = arith.constant 0 : index
      %c0_19 = arith.constant 0 : index
      %c0_20 = arith.constant 0 : index
      %34 = vector.load %arg6[%c0_18, %c0_19, %c0_20] : memref<1x8x128xf32, #tpu.memory_space<vmem>>, vector<1x8x128xf32>
      %35 = vector.shape_cast %34 : vector<1x8x128xf32> to vector<8x128xf32>
      %36 = vector.shape_cast %33 : vector<8x128xf32> to vector<1x8x128xf32>
      tpu.vector_store %arg6[%c0_18, %c0_19, %c0_20], %36 {strides = array<i32>} : memref<1x8x128xf32, #tpu.memory_space<vmem>>, vector<1x8x128xf32>,
    } else {
    }
    return
  }
  func.func @transform_0(%arg0: i32, %arg1: i32) -> (i32, i32) {
    %c1_i32 = arith.constant 1 : i32
    %0 = arith.muli %arg0, %c1_i32 : i32
    %1 = arith.addi %0, %arg1 : i32
    %c0_i32 = arith.constant 0 : i32
    %2 = arith.minsi %1, %c0_i32 : i32
    %c0_i32_0 = arith.constant 0 : i32
    %c0_i32_1 = arith.constant 0 : i32
    return %2, %c0_i32_0 : i32, i32
  }
  func.func @transform_1(%arg0: i32, %arg1: i32) -> (i32, i32) {
    %c1_i32 = arith.constant 1 : i32
    %0 = arith.muli %arg0, %c1_i32 : i32
    %1 = arith.addi %0, %arg1 : i32
    %c0_i32 = arith.constant 0 : i32
    %2 = arith.minsi %1, %c0_i32 : i32
    %c0_i32_0 = arith.constant 0 : i32
    %c0_i32_1 = arith.constant 0 : i32
    return %2, %c0_i32_0 : i32, i32
  }
  func.func @transform_2(%arg0: i32, %arg1: i32) -> (i32, i32) {
    %c1_i32 = arith.constant 1 : i32
    %0 = arith.muli %arg0, %c1_i32 : i32
    %1 = arith.addi %0, %arg1 : i32
    %c0_i32 = arith.constant 0 : i32
    %2 = arith.minsi %1, %c0_i32 : i32
    %c0_i32_0 = arith.constant 0 : i32
    %c0_i32_1 = arith.constant 0 : i32
    return %2, %c0_i32_0 : i32, i32
  }
  func.func @transform_3(%arg0: i32, %arg1: i32) -> (i32, i32) {
    %c1_i32 = arith.constant 1 : i32
    %0 = arith.muli %arg0, %c1_i32 : i32
    %1 = arith.addi %0, %arg1 : i32
    %c0_i32 = arith.constant 0 : i32
    %2 = arith.minsi %1, %c0_i32 : i32
    %c0_i32_0 = arith.constant 0 : i32
    %c0_i32_1 = arith.constant 0 : i32
    return %2, %c0_i32_0 : i32, i32
  }
  func.func @transform_4(%arg0: i32, %arg1: i32) -> (i32, i32, i32) {
    %c0_i32 = arith.constant 0 : i32
    %c0_i32_0 = arith.constant 0 : i32
    %c0_i32_1 = arith.constant 0 : i32
    return %arg0, %c0_i32, %c0_i32_0 : i32, i32, i32
  }
}

</mosaic_0001>

<llo_original>
// kernel: tpu_custom_call.1
$region0: #{tpu_custom_call.1}
  #allocation0 [shape = 'u32[]', space=smem, size = 0x4, offset = 0x4, fixed_abs, tag = 'smem constant byte address 0x4 - core index']
  #allocation1 [shape = 'u32[144,128]{1,0:T(1,128)}', space=vmem, size = 0x12000, scoped, tag = 'internal scratch']
  #allocation2 [shape = 'f32[8,128]{1,0:T(8,128)}', space=vmem, size = 0x1000, scoped, tag = 'scratch operand']
  %s0 = inlined_call_operand.hbm [shape: f32[8,128], index: 0, kind: input, shape index: {}]
  %s1 = inlined_call_operand.hbm [shape: f32[8,128], index: 1, kind: input, shape index: {}]
  %s2 = inlined_call_operand.hbm [shape: f32[8,128], index: 2, kind: input, shape index: {}]
  %s3 = inlined_call_operand.vmem [shape: f32[8,128], index: 3, kind: input, shape index: {}]
  %s4 = inlined_call_operand.hbm [shape: f32[1,8,128], index: 4, kind: output, shape index: {}]
  %s5 = sld [smem:[#allocation0]]
  $region54: #{tpu_custom_call.1} parent=0
    _
  %s7 = ssub.s32 1, %s5
  %s8 = scalar_select 0, %s7, %s5
  $region1: #{tpu_custom_call.1} parent=0
    #allocation3 [shape = 'u8[4096]{0}', space=vmem, size = 0x1000, scoped, tag = 'input window, operand 0, single buffered']
    #allocation4 [shape = 's32[1]{0}', space=sflag, size = 0x4, scoped, tag = 'scoped memory for tpu_custom_call.1']
    #allocation5 [shape = 's32[1]{0}', space=sflag, size = 0x4, scoped, tag = 'scoped memory for tpu_custom_call.1']
    #allocation6 [shape = 'u8[4096]{0}', space=vmem, size = 0x1000, scoped, tag = 'input window, operand 1, single buffered']
    #allocation7 [shape = 's32[1]{0}', space=sflag, size = 0x4, scoped, tag = 'scoped memory for tpu_custom_call.1']
    #allocation8 [shape = 'u8[4096]{0}', space=vmem, size = 0x1000, scoped, tag = 'input window, operand 2, single buffered']
    #allocation9 [shape = 'u8[4096]{0}', space=vmem, size = 0x1000, scoped, tag = 'output window, operand 0, single buffered']
    %9 = vsyncpa [#allocation4], 0
    %10 = vsyncpa [#allocation7], 0
    %11 = vsyncpa [#allocation5], 0
    // Predicated region
    $region2: #{tpu_custom_call.1} parent=1 // pred_check
      _
    $region3: #{tpu_custom_call.1} parent=1 // pred_check_branch
      %13 = sbr.rel (0) target = $region5
    $region4: #{tpu_custom_call.1} parent=1 // pred_region
      %s14 = sadd.s32 0, 0
      %p15 = scmp.lt.s32.totalorder %s14, 0
      %s16 = scalar_select %p15, %s14, 0
      %s18 = ssub.s32 128, 128
      %19 = vsyncadd [#allocation4], %s18
      %s20 = smul.addr %s16, 128
      %s21 = scalar_lea.hbm %s0, %s20
      %s23 = sshll.u32 [#allocation3], 4
      %s24 = int_to_ptr.vmem [resolvable:$true] %s23
      %26 = dma.hbm_to_vmem [thread:$0]  %s21, 128, %s24, [#allocation4]
    $region5: #{tpu_custom_call.1} parent=1 // pred_fallthru
      _
    // Predicated region
    $region6: #{tpu_custom_call.1} parent=1 // pred_check
      _
    $region7: #{tpu_custom_call.1} parent=1 // pred_check_branch
      %28 = sbr.rel (0) target = $region9
    $region8: #{tpu_custom_call.1} parent=1 // pred_region
      %s29 = sadd.s32 0, 0
      %p30 = scmp.lt.s32.totalorder %s29, 0
      %s31 = scalar_select %p30, %s29, 0
      %s33 = ssub.s32 128, 128
      %34 = vsyncadd [#allocation7], %s33
      %s35 = smul.addr %s31, 128
      %s36 = scalar_lea.hbm %s1, %s35
      %s38 = sshll.u32 [#allocation6], 4
      %s39 = int_to_ptr.vmem [resolvable:$true] %s38
      %41 = dma.hbm_to_vmem [thread:$0]  %s36, 128, %s39, [#allocation7]
    $region9: #{tpu_custom_call.1} parent=1 // pred_fallthru
      _
    // Predicated region
    $region10: #{tpu_custom_call.1} parent=1 // pred_check
      _
    $region11: #{tpu_custom_call.1} parent=1 // pred_check_branch
      %43 = sbr.rel (0) target = $region13
    $region12: #{tpu_custom_call.1} parent=1 // pred_region
      %s44 = sadd.s32 0, 0
      %p45 = scmp.lt.s32.totalorder %s44, 0
      %s46 = scalar_select %p45, %s44, 0
      %s48 = ssub.s32 128, 128
      %49 = vsyncadd [#allocation7], %s48
      %s50 = smul.addr %s46, 128
      %s51 = scalar_lea.hbm %s2, %s50
      %s53 = sshll.u32 [#allocation8], 4
      %s54 = int_to_ptr.vmem [resolvable:$true] %s53
      %56 = dma.hbm_to_vmem [thread:$0]  %s51, 128, %s54, [#allocation7]
    $region13: #{tpu_custom_call.1} parent=1 // pred_fallthru
      _
    // Predicated region
    $region14: #{tpu_custom_call.1} parent=1 // pred_check
      _
    $region15: #{tpu_custom_call.1} parent=1 // pred_check_branch
      %58 = sbr.rel (0) target = $region17
    $region16: #{tpu_custom_call.1} parent=1 // pred_region
      %s59 = sadd.s32 0, 0
      %p60 = scmp.lt.s32.totalorder %s59, 0
      %s61 = scalar_select %p60, %s59, 0
      %p62 = scmp.lt.s32.totalorder %s61, 0
      %s63 = scalar_select %p62, %s61, 0
      %s64 = smul.addr %s63, 8
      %s65 = scalar_lea.vmem %s3, %s64
      %s66 = sadd.s32 0, 0
      %p67 = scmp.lt.s32.totalorder %s66, 0
      %s68 = scalar_select %p67, %s66, 0
    $region17: #{tpu_custom_call.1} parent=1 // pred_fallthru
      _
    // Predicated region
    $region18: #{tpu_custom_call.1} parent=1 // pred_check
      _
    $region19: #{tpu_custom_call.1} parent=1 // pred_check_branch
      %70 = sbr.rel (0) target = $region21
    $region20: #{tpu_custom_call.1} parent=1 // pred_region
      %71 = dma.done [#allocation4], 128
    $region21: #{tpu_custom_call.1} parent=1 // pred_fallthru
      _
    // Predicated region
    $region22: #{tpu_custom_call.1} parent=1 // pred_check
      _
    $region23: #{tpu_custom_call.1} parent=1 // pred_check_branch
      %73 = sbr.rel (0) target = $region25
    $region24: #{tpu_custom_call.1} parent=1 // pred_region
      %74 = dma.done [#allocation7], 128
    $region25: #{tpu_custom_call.1} parent=1 // pred_fallthru
      _
    // Predicated region
    $region26: #{tpu_custom_call.1} parent=1 // pred_check
      _
    $region27: #{tpu_custom_call.1} parent=1 // pred_check_branch
      %76 = sbr.rel (0) target = $region29
    $region28: #{tpu_custom_call.1} parent=1 // pred_region
      %77 = dma.done [#allocation7], 128
    $region29: #{tpu_custom_call.1} parent=1 // pred_fallthru
      _
    %s78 = sadd.s32 0, 0
    %p79 = scmp.lt.s32.totalorder %s78, 0
    %s80 = scalar_select %p79, %s78, 0
    %p81 = scmp.lt.s32.totalorder %s80, 0
    %s82 = scalar_select %p81, %s80, 0
    %s83 = smul.addr %s82, 8
    %s84 = scalar_lea.vmem %s3, %s83
    %s85 = sadd.s32 0, 0
    %p86 = scmp.lt.s32.totalorder %s85, 0
    %s87 = scalar_select %p86, %s85, 0
    %s88 = sadd.s32 0, 0
    %p89 = scmp.lt.s32.totalorder %s88, 0
    %s90 = scalar_select %p89, %s88, 0
    %s91 = sadd.s32 0, 0
    %p92 = scmp.lt.s32.totalorder %s91, 0
    %s93 = scalar_select %p92, %s91, 0
    %s94 = sadd.s32 0, 0
    %p95 = scmp.lt.s32.totalorder %s94, 0
    %s96 = scalar_select %p95, %s94, 0
    %p97 = scmp.lt.s32.totalorder %s96, 0
    %s98 = scalar_select %p97, %s96, 0
    %s99 = smul.addr %s98, 8
    %s100 = scalar_lea.vmem %s3, %s99
    %s101 = sadd.s32 0, 0
    %p102 = scmp.lt.s32.totalorder %s101, 0
    %s103 = scalar_select %p102, %s101, 0
    %s104 = sadd.s32 0, 0
    %p105 = scmp.eq.s32.totalorder 0, 0
    // Predicated region
    $region30: #{tpu_custom_call.1} parent=1 // pred_check
      %p106 = pneg %p105
    $region31: #{tpu_custom_call.1} parent=1 // pred_check_branch
      %108 = sbr.rel (%p106) target = $region33
    $region32: #{tpu_custom_call.1} parent=1 // pred_region
      %109 = vst [vmem:[#allocation2] sm:$0xff] 0.0
    $region33: #{tpu_custom_call.1} parent=1 // pred_fallthru
      _
    %v110 = vld [vmem:[#allocation3] sm:$0xff]
    %v111 = vld [vmem:[#allocation6] sm:$0xff]
    %v112 = vsub.f32 %v110, %v111
    %v113 = vld [vmem:[#allocation8] sm:$0xff]
    %v114 = vld [vmem:[%s100] sm:$0xff]
    %v115 = vsub.f32 %v113, %v114
    %v116 = vsub.f32 %v112, %v115
    %v117 = vmul.f32 %v116, 0.1
    %v118 = vmin.f32 %v117, 0.0
    %v119 = vand.u32 2147483647, %v117
    %v120 = vsub.f32 0.0, %v119
    %v121 = vmul.f32 %v120, 1.442695
    %v122 = vpow.pop %v121
    %v123 = vadd.f32 %v122, 1.0
    %v124 = vlog2.pop %v123
    %v125 = vmul.f32 %v124, 0.6931472
    %v126 = vmul.f32 -0.5, %v122
    %v127 = vadd.f32 %v126, 1.0
    %v128 = vmul.f32 %v127, %v122
    %v129 = vand.u32 2147483647, %v122
    %vm130 = vcmp.lt.f32.partialorder %v129, 0.0004427343
    %v131 = vsel %vm130, %v128, %v125
    %v132 = vsub.f32 %v118, %v131
    %v133 = vsub.f32 0.0, %v132
    %p134 = scmp.ge.s32.totalorder %s104, 0
    %p135 = scmp.lt.s32.totalorder %s104, 0
    // Predicated region
    $region34: #{tpu_custom_call.1} parent=1 // pred_check
      %p136 = pneg %p135
    $region35: #{tpu_custom_call.1} parent=1 // pred_check_branch
      %138 = sbr.rel (%p136) target = $region37
    $region36: #{tpu_custom_call.1} parent=1 // pred_region
      %v139 = vld [vmem:[#allocation2] sm:$0xff]
      %v140 = vadd.f32 %v133, 0.0
      %v141 = vadd.f32 %v139, %v140
      %142 = vst [vmem:[#allocation2] sm:$0xff] %v141
    $region37: #{tpu_custom_call.1} parent=1 // pred_fallthru
      _
    // Predicated region
    $region38: #{tpu_custom_call.1} parent=1 // pred_check
      %p143 = pneg %p134
    $region39: #{tpu_custom_call.1} parent=1 // pred_check_branch
      %145 = sbr.rel (%p143) target = $region41
    $region40: #{tpu_custom_call.1} parent=1 // pred_region
      %v146 = vlaneseq
      %v147 = vshrl.u32 %v146, 7
      %v148 = vlaneseq
      %v149 = vand.u32 %v148, 127
      %s150 = smul.u32 %s104, 8
      %v151 = vstv %s150
      %v152 = vadd.s32 %v151, %v147
      %v153 = vmul.u32 %v152, 128
      %v154 = vadd.s32 %v153, %v149
      %vm155 = vcmp.lt.s32.totalorder %v154, 8
      %v156 = vsel %vm155, %v133, 0.0
      %v157 = vld [vmem:[#allocation2] sm:$0xff]
      %v158 = vadd.f32 %v156, 0.0
      %v159 = vadd.f32 %v157, %v158
      %160 = vst [vmem:[#allocation2] sm:$0xff] %v159
    $region41: #{tpu_custom_call.1} parent=1 // pred_fallthru
      _
    // Predicated region
    $region42: #{tpu_custom_call.1} parent=1 // pred_check
      %p161 = pneg %p105
    $region43: #{tpu_custom_call.1} parent=1 // pred_check_branch
      %163 = sbr.rel (%p161) target = $region45
    $region44: #{tpu_custom_call.1} parent=1 // pred_region
      %v164 = vld [vmem:[#allocation2] sm:$0xff]
      %165 = vst [vmem:[#allocation9] sm:$0xff] %v164
    $region45: #{tpu_custom_call.1} parent=1 // pred_fallthru
      _
    // Predicated region
    $region46: #{tpu_custom_call.1} parent=1 // pred_check
      _
    $region47: #{tpu_custom_call.1} parent=1 // pred_check_branch
      %167 = sbr.rel (0) target = $region49
    $region48: #{tpu_custom_call.1} parent=1 // pred_region
      %s169 = ssub.s32 128, 128
      %170 = vsyncadd [#allocation5], %s169
      %s172 = sshll.u32 [#allocation9], 4
      %s173 = int_to_ptr.vmem [resolvable:$true] %s172
      %175 = dma.vmem_to_hbm [thread:$0]  %s173, 128, %s4, [#allocation5]
    $region49: #{tpu_custom_call.1} parent=1 // pred_fallthru
      _
    // Predicated region
    $region50: #{tpu_custom_call.1} parent=1 // pred_check
      _
    $region51: #{tpu_custom_call.1} parent=1 // pred_check_branch
      %177 = sbr.rel (0) target = $region53
    $region52: #{tpu_custom_call.1} parent=1 // pred_region
      %178 = dma.done [#allocation5], 128
    $region53: #{tpu_custom_call.1} parent=1 // pred_fallthru
      _
    %179 = vsyncpa [#allocation4], 1
    %180 = vsyncpa [#allocation7], 1
    %181 = vsyncpa [#allocation5], 1

</llo_original>
